<compile_context>
chip_gen: v7x
topology: tpu7x:2x2x1
jax: 0.10.0
libtpu: 0.0.40
codegen_flags: <defaults>
</compile_context>

<pallas_src>
import functools
import math

import jax
import jax.numpy as jnp
from jax.experimental import pallas as pl
from jax.experimental.pallas import tpu as pltpu


def _cdiv(a, b):
    return (a + b - 1) // b


def _round_up(n, m):
    return _cdiv(n, m) * m


def _atan_f32(x):
    """Elementwise arctan from Pallas-lowerable primitives (Cephes atanf).

    The two divides go through pl.reciprocal (EUP slot; approx=False to stay
    inside the 2e-4 tolerance).  Sign is re-applied with a bitwise copysign
    (bitcasts are free reinterprets) instead of a where/mul pair — the atan
    chain is the VALU-bound critical path on v7x.
    """
    a = jnp.abs(x)
    big = a > 2.414213562373095          # tan(3*pi/8)
    med = a > 0.4142135623730950         # tan(pi/8)
    safe_a = jnp.maximum(a, 1e-30)       # keeps the discarded 1/a branch finite
    inv_a = pl.reciprocal(safe_a, approx=False)
    inv_ap1 = pl.reciprocal(a + 1.0, approx=False)
    xr = jnp.where(big, -inv_a, jnp.where(med, (a - 1.0) * inv_ap1, a))
    offs = jnp.where(big, jnp.float32(math.pi / 2.0),
                     jnp.where(med, jnp.float32(math.pi / 4.0), jnp.float32(0.0)))
    z = xr * xr
    p = ((((8.05374449538e-2 * z - 1.38776856032e-1) * z
           + 1.99777106478e-1) * z - 3.33329491539e-1) * z * xr) + xr
    r = offs + p                          # == atan(|x|) >= 0
    sign = pltpu.bitcast(x, jnp.uint32) & jnp.uint32(0x80000000)
    return pltpu.bitcast(pltpu.bitcast(r, jnp.uint32) | sign, jnp.float32)


def _glow_kernel_fused(x_ref, w1_ref, b1_ref, w2_ref, b2_ref,
                       y_ref, jac_ref, *, clamp, split1, use_bf16):
    """Aligned path: single (rt, H) input / output, merged second matmul."""
    ce = jnp.float32(clamp * 0.636)       # pre-folded clamp * 0.636
    inv_clamp = jnp.float32(1.0 / clamp)  # pre-folded 1/clamp
    split2 = x_ref.shape[1] - split1

    x1 = x_ref[:, :split1]                # 128-aligned in-kernel slices (free)
    x2 = x_ref[:, split1:]

    # e(s) = exp(clamp * 0.636 * atan(s / clamp)); log_e(s) is its log.
    # rev=False: s2, t2 := x1, x2 (no subnet), so y1 = e(x1)*x1 + x2.
    log_e_x1 = ce * _atan_f32(x1 * inv_clamp)
    y1 = jnp.exp(log_e_x1) * x1 + x2

    # subnet s1: Linear(split1 -> hid) -> ReLU -> Linear(hid -> 2*split2)
    lhs = y1.astype(jnp.bfloat16) if use_bf16 else y1
    h = jnp.dot(lhs, w1_ref[...], preferred_element_type=jnp.float32) + b1_ref[...]
    h = jnp.maximum(h, 0.0)
    hh = h.astype(jnp.bfloat16) if use_bf16 else h
    r1 = jnp.dot(hh, w2_ref[...], preferred_element_type=jnp.float32) + b2_ref[...]
    s1 = r1[:, :split2]                   # 128-aligned slice of the joint [s,t]
    t1 = r1[:, split2:]

    log_e_s1 = ce * _atan_f32(s1 * inv_clamp)
    y2 = jnp.exp(log_e_s1) * x2 + t1

    y_ref[:, :split1] = y1
    y_ref[:, split1:] = y2
    # per-row contribution to log|det J|; summed over seq in the wrapper.
    jac_ref[...] = (jnp.sum(log_e_s1, axis=-1, keepdims=True)
                    + jnp.sum(log_e_x1, axis=-1, keepdims=True))


def _glow_kernel_split(x1_ref, x2_ref, w1_ref, b1_ref, w2s_ref, b2s_ref,
                       w2t_ref, b2t_ref, y1_ref, y2_ref, jac_ref,
                       *, clamp, use_bf16):
    """Fallback path for small / non-128-aligned half-widths: pre-split x,
    pre-split w2 so every matmul output and every store is lane-dense."""
    ce = jnp.float32(clamp * 0.636)
    inv_clamp = jnp.float32(1.0 / clamp)

    x1 = x1_ref[...]
    x2 = x2_ref[...]

    log_e_x1 = ce * _atan_f32(x1 * inv_clamp)
    y1 = jnp.exp(log_e_x1) * x1 + x2

    lhs = y1.astype(jnp.bfloat16) if use_bf16 else y1
    h = jnp.dot(lhs, w1_ref[...], preferred_element_type=jnp.float32) + b1_ref[...]
    h = jnp.maximum(h, 0.0)
    hh = h.astype(jnp.bfloat16) if use_bf16 else h
    s1 = jnp.dot(hh, w2s_ref[...], preferred_element_type=jnp.float32) + b2s_ref[...]
    t1 = jnp.dot(hh, w2t_ref[...], preferred_element_type=jnp.float32) + b2t_ref[...]

    log_e_s1 = ce * _atan_f32(s1 * inv_clamp)
    y2 = jnp.exp(log_e_s1) * x2 + t1

    y1_ref[...] = y1
    y2_ref[...] = y2
    jac_ref[...] = (jnp.sum(log_e_s1, axis=-1, keepdims=True)
                    + jnp.sum(log_e_x1, axis=-1, keepdims=True))


def glow_coupling_forward(x, params, *, clamp=5.0, row_tile=512, use_bf16=False):
    """GLOW coupling block forward (rev=False), feature-axis semantics.

    x: (B, S, H) float32.  Returns (y, last_jac): y (B, S, H), last_jac (B,).
    use_bf16: opt-in bf16 matmul operands (f32 accumulation).  Default False
    because bf16 operands carry ~1e-3 relative error into t1/y2 (exceeds the
    2e-4 tolerance vs an f32 reference).
    """
    B, S, H = x.shape
    split1 = H // 2
    split2 = H - split1
    N = B * S

    w1, b1 = params["w1"], params["b1"]
    w2, b2 = params["w2"], params["b2"]
    hid = w1.shape[1]

    # --- row-tile sizing: big tiles for DMA efficiency, but >= 4 grid steps
    # (>= 2 per TensorCore on v7x megacore) when the row count permits -------
    if N <= row_tile:
        rt = N                                   # full-extent block (always legal)
    else:
        rt = _round_up(row_tile, 8)              # partial last block is masked
    target_steps = 4
    if N >= target_steps * 8:
        while rt > 8 and _cdiv(N, rt) < target_steps:
            rt = max(8, _round_up(rt // 2, 8))
    n_tiles = _cdiv(N, rt)

    x2d = x.reshape(N, H).astype(jnp.float32)

    # --- pad hid to a lane multiple when it is large but unaligned ----------
    if hid > 128 and hid % 128 != 0:
        hid_p = _round_up(hid, 128)
        w1 = jnp.pad(w1, ((0, 0), (0, hid_p - hid)))
        b1 = jnp.pad(b1, ((0, 0), (0, hid_p - hid)))
        w2 = jnp.pad(w2, ((0, hid_p - hid), (0, 0)))
        hid = hid_p

    if use_bf16:
        w1 = w1.astype(jnp.bfloat16)
        w2 = w2.astype(jnp.bfloat16)

    aligned = (split1 % 128 == 0) and (split2 % 128 == 0)

    # --- explicit VMEM budget: single-buffered weights, double-buffered I/O
    # tiles + outputs + intermediate headroom; capped below v7x's 64 MiB ------
    wbytes = 2 if use_bf16 else 4
    weight_bytes = (w1.size + w2.size) * wbytes + (b1.size + b2.size) * 4
    io_tile_bytes = 2 * (rt * H * 4) + 2 * (rt * H * 4 + rt * 4)
    interm_bytes = 6 * rt * max(H, hid) * 4
    vmem_limit = int(min(48 * 2**20,
                         max(32 * 2**20,
                             weight_bytes + io_tile_bytes + interm_bytes + (4 << 20))))

    cparams = pltpu.CompilerParams(
        dimension_semantics=("parallel",),
        vmem_limit_bytes=vmem_limit)

    resident = dict(pipeline_mode=pl.Buffered(1))   # weights never re-fetched

    if aligned:
        kernel = functools.partial(_glow_kernel_fused, clamp=float(clamp),
                                   split1=split1, use_bf16=use_bf16)
        y2d, jac_rows = pl.pallas_call(
            kernel,
            out_shape=(jax.ShapeDtypeStruct((N, H), jnp.float32),
                       jax.ShapeDtypeStruct((N, 1), jnp.float32)),
            grid=(n_tiles,),
            in_specs=[
                pl.BlockSpec((rt, H), lambda i: (i, 0)),            # x row tile
                pl.BlockSpec(w1.shape, lambda i: (0, 0), **resident),
                pl.BlockSpec(b1.shape, lambda i: (0, 0), **resident),
                pl.BlockSpec(w2.shape, lambda i: (0, 0), **resident),
                pl.BlockSpec(b2.shape, lambda i: (0, 0), **resident),
            ],
            out_specs=(
                pl.BlockSpec((rt, H), lambda i: (i, 0)),
                pl.BlockSpec((rt, 1), lambda i: (i, 0)),
            ),
            compiler_params=cparams,
        )(x2d, w1, b1, w2, b2)
        y = y2d.reshape(B, S, H)
    else:
        # small / unaligned H: pre-split features and the joint [s,t] weights
        x1 = x2d[:, :split1]
        x2 = x2d[:, split1:]
        w2_s, w2_t = w2[:, :split2], w2[:, split2:]
        b2_s, b2_t = b2[:, :split2], b2[:, split2:]
        kernel = functools.partial(_glow_kernel_split, clamp=float(clamp),
                                   use_bf16=use_bf16)
        y1_out, y2_out, jac_rows = pl.pallas_call(
            kernel,
            out_shape=(jax.ShapeDtypeStruct((N, split1), jnp.float32),
                       jax.ShapeDtypeStruct((N, split2), jnp.float32),
                       jax.ShapeDtypeStruct((N, 1), jnp.float32)),
            grid=(n_tiles,),
            in_specs=[
                pl.BlockSpec((rt, split1), lambda i: (i, 0)),
                pl.BlockSpec((rt, split2), lambda i: (i, 0)),
                pl.BlockSpec(w1.shape, lambda i: (0, 0), **resident),
                pl.BlockSpec(b1.shape, lambda i: (0, 0), **resident),
                pl.BlockSpec(w2_s.shape, lambda i: (0, 0), **resident),
                pl.BlockSpec(b2_s.shape, lambda i: (0, 0), **resident),
                pl.BlockSpec(w2_t.shape, lambda i: (0, 0), **resident),
                pl.BlockSpec(b2_t.shape, lambda i: (0, 0), **resident),
            ],
            out_specs=(
                pl.BlockSpec((rt, split1), lambda i: (i, 0)),
                pl.BlockSpec((rt, split2), lambda i: (i, 0)),
                pl.BlockSpec((rt, 1), lambda i: (i, 0)),
            ),
            compiler_params=cparams,
        )(x1, x2, w1, b1, w2_s, b2_s, w2_t, b2_t)
        y = jnp.concatenate([y1_out, y2_out], axis=-1).reshape(B, S, H)

    last_jac = jac_rows[:, 0].reshape(B, S).sum(axis=1)
    return y, last_jac


def init_subnet_params(key, dims_in, dims_out, reduction_factor):
    """Deterministic init mimicking nn.Linear default (U(-1/sqrt(fan_in), ...))."""
    hid = dims_in // reduction_factor
    k1, k2, k3, k4 = jax.random.split(key, 4)
    lim1 = 1.0 / math.sqrt(dims_in)
    lim2 = 1.0 / math.sqrt(hid)
    return {
        "w1": jax.random.uniform(k1, (dims_in, hid), jnp.float32, -lim1, lim1),
        "b1": jax.random.uniform(k2, (1, hid), jnp.float32, -lim1, lim1),
        "w2": jax.random.uniform(k3, (hid, dims_out), jnp.float32, -lim2, lim2),
        "b2": jax.random.uniform(k4, (1, dims_out), jnp.float32, -lim2, lim2),
    }


if __name__ == "__main__":
    B, S, H = 2, 8, 32
    clamp = 5.0
    reduction_factor = 2
    split1 = H // 2          # split_len1
    split2 = H - H // 2      # split_len2

    key = jax.random.PRNGKey(0)
    kx, kp1, kp2 = jax.random.split(key, 3)
    x = jax.random.normal(kx, (B, S, H), jnp.float32)

    # s1 subnet: in = split_len1, out = 2 * split_len2 (only subnet used rev=False)
    params_s1 = init_subnet_params(kp1, split1, 2 * split2, reduction_factor)
    # s2 subnet exists in the module but is only used by the rev=True branch.
    params_s2 = init_subnet_params(kp2, split2, 2 * split1, reduction_factor)
    del params_s2

    fwd = jax.jit(functools.partial(glow_coupling_forward, clamp=clamp))
    y, last_jac = fwd(x, params_s1)
    jax.block_until_ready((y, last_jac))

    # Pure-JAX reference of the same (feature-axis) semantics as a sanity check.
    def ref(x, p):
        x1, x2 = x[..., :split1], x[..., split1:]
        log_e = lambda s: clamp * 0.636 * jnp.arctan(s / clamp)
        y1 = jnp.exp(log_e(x1)) * x1 + x2
        h = jnp.maximum(y1 @ p["w1"] + p["b1"], 0.0)
        r1 = h @ p["w2"] + p["b2"]
        s1, t1 = r1[..., :split2], r1[..., split2:]
        y2 = jnp.exp(log_e(s1)) * x2 + t1
        jac = jnp.sum(log_e(s1) + log_e(x1), axis=(1, 2))
        return jnp.concatenate([y1, y2], axis=-1), jac

    y_ref, jac_ref = ref(x, params_s1)
    assert jnp.allclose(y, y_ref, rtol=2e-4, atol=2e-4), float(jnp.max(jnp.abs(y - y_ref)))
    assert jnp.allclose(last_jac, jac_ref, rtol=2e-4, atol=2e-4)
    print("KERNEL_OK")
</pallas_src>

<mosaic_0001>
module attributes {stable_mosaic.version = 11 : i64} {
  func.func @_glow_kernel_split(%arg0: i32, %arg1: memref<16x16xf32, #tpu.memory_space<vmem>>, %arg2: memref<16x16xf32, #tpu.memory_space<vmem>>, %arg3: memref<16x8xf32, #tpu.memory_space<vmem>>, %arg4: memref<1x8xf32, #tpu.memory_space<vmem>>, %arg5: memref<8x16xf32, #tpu.memory_space<vmem>>, %arg6: memref<1x16xf32, #tpu.memory_space<vmem>>, %arg7: memref<8x16xf32, #tpu.memory_space<vmem>>, %arg8: memref<1x16xf32, #tpu.memory_space<vmem>>, %arg9: memref<16x16xf32, #tpu.memory_space<vmem>>, %arg10: memref<16x16xf32, #tpu.memory_space<vmem>>, %arg11: memref<16x1xf32, #tpu.memory_space<vmem>>) attributes {dimension_semantics = [#tpu.dimension_semantics<parallel>], iteration_bounds = array<i64: 1>, scalar_prefetch = 0 : i64, scratch_operands = 0 : i64, tpu.core_type = #tpu.core_type<tc>, window_params = [{transform_indices = @transform_0, window_bounds = array<i64: 16, 16>}, {transform_indices = @transform_1, window_bounds = array<i64: 16, 16>}, {pipeline_mode = #tpu.pipeline_mode<synchronous>, transform_indices = @transform_2, window_bounds = array<i64: 16, 8>}, {pipeline_mode = #tpu.pipeline_mode<synchronous>, transform_indices = @transform_3, window_bounds = array<i64: 1, 8>}, {pipeline_mode = #tpu.pipeline_mode<synchronous>, transform_indices = @transform_4, window_bounds = array<i64: 8, 16>}, {pipeline_mode = #tpu.pipeline_mode<synchronous>, transform_indices = @transform_5, window_bounds = array<i64: 1, 16>}, {pipeline_mode = #tpu.pipeline_mode<synchronous>, transform_indices = @transform_6, window_bounds = array<i64: 8, 16>}, {pipeline_mode = #tpu.pipeline_mode<synchronous>, transform_indices = @transform_7, window_bounds = array<i64: 1, 16>}, {transform_indices = @transform_8, window_bounds = array<i64: 16, 16>}, {transform_indices = @transform_9, window_bounds = array<i64: 16, 16>}, {transform_indices = @transform_10, window_bounds = array<i64: 16, 1>}]} {
    %c0 = arith.constant 0 : index
    %c0_0 = arith.constant 0 : index
    %0 = vector.load %arg1[%c0, %c0_0] : memref<16x16xf32, #tpu.memory_space<vmem>>, vector<16x16xf32>
    %c0_1 = arith.constant 0 : index
    %c0_2 = arith.constant 0 : index
    %1 = vector.load %arg2[%c0_1, %c0_2] : memref<16x16xf32, #tpu.memory_space<vmem>>, vector<16x16xf32>
    %cst = arith.constant 2.000000e-01 : f32
    %2 = vector.broadcast %cst : f32 to vector<16x16xf32>
    %3 = arith.mulf %0, %2 : vector<16x16xf32>
    %4 = math.absf %3 : vector<16x16xf32>
    %cst_3 = arith.constant 2.41421366 : f32
    %5 = vector.broadcast %cst_3 : f32 to vector<16x16xf32>
    %6 = arith.cmpf ogt, %4, %5 : vector<16x16xf32>
    %cst_4 = arith.constant 0.414213568 : f32
    %7 = vector.broadcast %cst_4 : f32 to vector<16x16xf32>
    %8 = arith.cmpf ogt, %4, %7 : vector<16x16xf32>
    %cst_5 = arith.constant 1.000000e-30 : f32
    %9 = vector.broadcast %cst_5 : f32 to vector<16x16xf32>
    %10 = arith.maximumf %4, %9 : vector<16x16xf32>
    %11 = tpu.reciprocal %10 : vector<16x16xf32> -> vector<16x16xf32>
    %cst_6 = arith.constant 1.000000e+00 : f32
    %12 = vector.broadcast %cst_6 : f32 to vector<16x16xf32>
    %13 = arith.addf %4, %12 : vector<16x16xf32>
    %14 = tpu.reciprocal %13 : vector<16x16xf32> -> vector<16x16xf32>
    %cst_7 = arith.constant 0.000000e+00 : f32
    %15 = vector.broadcast %cst_7 : f32 to vector<16x16xf32>
    %16 = arith.subf %15, %11 : vector<16x16xf32>
    %cst_8 = arith.constant 1.000000e+00 : f32
    %17 = vector.broadcast %cst_8 : f32 to vector<16x16xf32>
    %18 = arith.subf %4, %17 : vector<16x16xf32>
    %19 = arith.mulf %18, %14 : vector<16x16xf32>
    %20 = arith.select %8, %19, %4 : vector<16x16xi1>, vector<16x16xf32>
    %21 = arith.select %6, %16, %20 : vector<16x16xi1>, vector<16x16xf32>
    %cst_9 = arith.constant 0.785398185 : f32
    %cst_10 = arith.constant 0.000000e+00 : f32
    %22 = vector.broadcast %cst_9 : f32 to vector<16x16xf32>
    %23 = vector.broadcast %cst_10 : f32 to vector<16x16xf32>
    %24 = arith.select %8, %22, %23 : vector<16x16xi1>, vector<16x16xf32>
    %cst_11 = arith.constant 1.57079637 : f32
    %25 = vector.broadcast %cst_11 : f32 to vector<16x16xf32>
    %26 = arith.select %6, %25, %24 : vector<16x16xi1>, vector<16x16xf32>
    %27 = arith.mulf %21, %21 : vector<16x16xf32>
    %cst_12 = arith.constant 0.0805374458 : f32
    %28 = vector.broadcast %cst_12 : f32 to vector<16x16xf32>
    %29 = arith.mulf %28, %27 : vector<16x16xf32>
    %cst_13 = arith.constant 0.138776854 : f32
    %30 = vector.broadcast %cst_13 : f32 to vector<16x16xf32>
    %31 = arith.subf %29, %30 : vector<16x16xf32>
    %32 = arith.mulf %31, %27 : vector<16x16xf32>
    %cst_14 = arith.constant 0.199777111 : f32
    %33 = vector.broadcast %cst_14 : f32 to vector<16x16xf32>
    %34 = arith.addf %32, %33 : vector<16x16xf32>
    %35 = arith.mulf %34, %27 : vector<16x16xf32>
    %cst_15 = arith.constant 0.333329499 : f32
    %36 = vector.broadcast %cst_15 : f32 to vector<16x16xf32>
    %37 = arith.subf %35, %36 : vector<16x16xf32>
    %38 = arith.mulf %37, %27 : vector<16x16xf32>
    %39 = arith.mulf %38, %21 : vector<16x16xf32>
    %40 = arith.addf %39, %21 : vector<16x16xf32>
    %41 = arith.addf %26, %40 : vector<16x16xf32>
    %42 = tpu.bitcast %3 : vector<16x16xf32> -> vector<16x16xi32>
    %c-2147483648_i32 = arith.constant -2147483648 : i32
    %43 = vector.broadcast %c-2147483648_i32 : i32 to vector<16x16xi32>
    %44 = arith.andi %42, %43 : vector<16x16xi32>
    %45 = tpu.bitcast %41 : vector<16x16xf32> -> vector<16x16xi32>
    %46 = arith.ori %45, %44 : vector<16x16xi32>
    %47 = tpu.bitcast %46 : vector<16x16xi32> -> vector<16x16xf32>
    %cst_16 = arith.constant 3.180000e+00 : f32
    %48 = vector.broadcast %cst_16 : f32 to vector<16x16xf32>
    %49 = arith.mulf %48, %47 : vector<16x16xf32>
    %50 = math.exp %49 : vector<16x16xf32>
    %51 = arith.mulf %50, %0 : vector<16x16xf32>
    %52 = arith.addf %51, %1 : vector<16x16xf32>
    %c0_17 = arith.constant 0 : index
    %c0_18 = arith.constant 0 : index
    %53 = vector.load %arg3[%c0_17, %c0_18] : memref<16x8xf32, #tpu.memory_space<vmem>>, vector<16x8xf32>
    %cst_19 = arith.constant dense<0.000000e+00> : vector<16x8xf32>
    %54 = tpu.matmul %52, %53, %cst_19 {dimension_numbers = #tpu.dot_dimension_numbers<[1], [0], [0], [1], [0, 0, 1, 1], [], []>} : vector<16x16xf32>, vector<16x8xf32>, vector<16x8xf32> -> vector<16x8xf32>
    %c0_20 = arith.constant 0 : index
    %c0_21 = arith.constant 0 : index
    %55 = vector.load %arg4[%c0_20, %c0_21] : memref<1x8xf32, #tpu.memory_space<vmem>>, vector<1x8xf32>
    %56 = vector.broadcast %55 : vector<1x8xf32> to vector<16x8xf32>
    %57 = arith.addf %54, %56 : vector<16x8xf32>
    %cst_22 = arith.constant 0.000000e+00 : f32
    %58 = vector.broadcast %cst_22 : f32 to vector<16x8xf32>
    %59 = arith.maximumf %57, %58 : vector<16x8xf32>
    %c0_23 = arith.constant 0 : index
    %c0_24 = arith.constant 0 : index
    %60 = vector.load %arg5[%c0_23, %c0_24] : memref<8x16xf32, #tpu.memory_space<vmem>>, vector<8x16xf32>
    %cst_25 = arith.constant dense<0.000000e+00> : vector<16x16xf32>
    %61 = tpu.matmul %59, %60, %cst_25 {dimension_numbers = #tpu.dot_dimension_numbers<[1], [0], [0], [1], [0, 0, 1, 1], [], []>} : vector<16x8xf32>, vector<8x16xf32>, vector<16x16xf32> -> vector<16x16xf32>
    %c0_26 = arith.constant 0 : index
    %c0_27 = arith.constant 0 : index
    %62 = vector.load %arg6[%c0_26, %c0_27] : memref<1x16xf32, #tpu.memory_space<vmem>>, vector<1x16xf32>
    %63 = vector.broadcast %62 : vector<1x16xf32> to vector<16x16xf32>
    %64 = arith.addf %61, %63 : vector<16x16xf32>
    %c0_28 = arith.constant 0 : index
    %c0_29 = arith.constant 0 : index
    %65 = vector.load %arg7[%c0_28, %c0_29] : memref<8x16xf32, #tpu.memory_space<vmem>>, vector<8x16xf32>
    %cst_30 = arith.constant dense<0.000000e+00> : vector<16x16xf32>
    %66 = tpu.matmul %59, %65, %cst_30 {dimension_numbers = #tpu.dot_dimension_numbers<[1], [0], [0], [1], [0, 0, 1, 1], [], []>} : vector<16x8xf32>, vector<8x16xf32>, vector<16x16xf32> -> vector<16x16xf32>
    %c0_31 = arith.constant 0 : index
    %c0_32 = arith.constant 0 : index
    %67 = vector.load %arg8[%c0_31, %c0_32] : memref<1x16xf32, #tpu.memory_space<vmem>>, vector<1x16xf32>
    %68 = vector.broadcast %67 : vector<1x16xf32> to vector<16x16xf32>
    %69 = arith.addf %66, %68 : vector<16x16xf32>
    %cst_33 = arith.constant 2.000000e-01 : f32
    %70 = vector.broadcast %cst_33 : f32 to vector<16x16xf32>
    %71 = arith.mulf %64, %70 : vector<16x16xf32>
    %72 = math.absf %71 : vector<16x16xf32>
    %cst_34 = arith.constant 2.41421366 : f32
    %73 = vector.broadcast %cst_34 : f32 to vector<16x16xf32>
    %74 = arith.cmpf ogt, %72, %73 : vector<16x16xf32>
    %cst_35 = arith.constant 0.414213568 : f32
    %75 = vector.broadcast %cst_35 : f32 to vector<16x16xf32>
    %76 = arith.cmpf ogt, %72, %75 : vector<16x16xf32>
    %cst_36 = arith.constant 1.000000e-30 : f32
    %77 = vector.broadcast %cst_36 : f32 to vector<16x16xf32>
    %78 = arith.maximumf %72, %77 : vector<16x16xf32>
    %79 = tpu.reciprocal %78 : vector<16x16xf32> -> vector<16x16xf32>
    %cst_37 = arith.constant 1.000000e+00 : f32
    %80 = vector.broadcast %cst_37 : f32 to vector<16x16xf32>
    %81 = arith.addf %72, %80 : vector<16x16xf32>
    %82 = tpu.reciprocal %81 : vector<16x16xf32> -> vector<16x16xf32>
    %cst_38 = arith.constant 0.000000e+00 : f32
    %83 = vector.broadcast %cst_38 : f32 to vector<16x16xf32>
    %84 = arith.subf %83, %79 : vector<16x16xf32>
    %cst_39 = arith.constant 1.000000e+00 : f32
    %85 = vector.broadcast %cst_39 : f32 to vector<16x16xf32>
    %86 = arith.subf %72, %85 : vector<16x16xf32>
    %87 = arith.mulf %86, %82 : vector<16x16xf32>
    %88 = arith.select %76, %87, %72 : vector<16x16xi1>, vector<16x16xf32>
    %89 = arith.select %74, %84, %88 : vector<16x16xi1>, vector<16x16xf32>
    %cst_40 = arith.constant 0.785398185 : f32
    %cst_41 = arith.constant 0.000000e+00 : f32
    %90 = vector.broadcast %cst_40 : f32 to vector<16x16xf32>
    %91 = vector.broadcast %cst_41 : f32 to vector<16x16xf32>
    %92 = arith.select %76, %90, %91 : vector<16x16xi1>, vector<16x16xf32>
    %cst_42 = arith.constant 1.57079637 : f32
    %93 = vector.broadcast %cst_42 : f32 to vector<16x16xf32>
    %94 = arith.select %74, %93, %92 : vector<16x16xi1>, vector<16x16xf32>
    %95 = arith.mulf %89, %89 : vector<16x16xf32>
    %cst_43 = arith.constant 0.0805374458 : f32
    %96 = vector.broadcast %cst_43 : f32 to vector<16x16xf32>
    %97 = arith.mulf %96, %95 : vector<16x16xf32>
    %cst_44 = arith.constant 0.138776854 : f32
    %98 = vector.broadcast %cst_44 : f32 to vector<16x16xf32>
    %99 = arith.subf %97, %98 : vector<16x16xf32>
    %100 = arith.mulf %99, %95 : vector<16x16xf32>
    %cst_45 = arith.constant 0.199777111 : f32
    %101 = vector.broadcast %cst_45 : f32 to vector<16x16xf32>
    %102 = arith.addf %100, %101 : vector<16x16xf32>
    %103 = arith.mulf %102, %95 : vector<16x16xf32>
    %cst_46 = arith.constant 0.333329499 : f32
    %104 = vector.broadcast %cst_46 : f32 to vector<16x16xf32>
    %105 = arith.subf %103, %104 : vector<16x16xf32>
    %106 = arith.mulf %105, %95 : vector<16x16xf32>
    %107 = arith.mulf %106, %89 : vector<16x16xf32>
    %108 = arith.addf %107, %89 : vector<16x16xf32>
    %109 = arith.addf %94, %108 : vector<16x16xf32>
    %110 = tpu.bitcast %71 : vector<16x16xf32> -> vector<16x16xi32>
    %c-2147483648_i32_47 = arith.constant -2147483648 : i32
    %111 = vector.broadcast %c-2147483648_i32_47 : i32 to vector<16x16xi32>
    %112 = arith.andi %110, %111 : vector<16x16xi32>
    %113 = tpu.bitcast %109 : vector<16x16xf32> -> vector<16x16xi32>
    %114 = arith.ori %113, %112 : vector<16x16xi32>
    %115 = tpu.bitcast %114 : vector<16x16xi32> -> vector<16x16xf32>
    %cst_48 = arith.constant 3.180000e+00 : f32
    %116 = vector.broadcast %cst_48 : f32 to vector<16x16xf32>
    %117 = arith.mulf %116, %115 : vector<16x16xf32>
    %118 = math.exp %117 : vector<16x16xf32>
    %119 = arith.mulf %118, %1 : vector<16x16xf32>
    %120 = arith.addf %119, %69 : vector<16x16xf32>
    %c0_49 = arith.constant 0 : index
    %c0_50 = arith.constant 0 : index
    %121 = vector.load %arg9[%c0_49, %c0_50] : memref<16x16xf32, #tpu.memory_space<vmem>>, vector<16x16xf32>
    tpu.vector_store %arg9[%c0_49, %c0_50], %52 {strides = array<i32>} : memref<16x16xf32, #tpu.memory_space<vmem>>, vector<16x16xf32>,
    %c0_51 = arith.constant 0 : index
    %c0_52 = arith.constant 0 : index
    %122 = vector.load %arg10[%c0_51, %c0_52] : memref<16x16xf32, #tpu.memory_space<vmem>>, vector<16x16xf32>
    tpu.vector_store %arg10[%c0_51, %c0_52], %120 {strides = array<i32>} : memref<16x16xf32, #tpu.memory_space<vmem>>, vector<16x16xf32>,
    %cst_53 = arith.constant dense<0.000000e+00> : vector<16xf32>
    %123 = vector.multi_reduction <add>, %117, %cst_53 [1] : vector<16x16xf32> to vector<16xf32>
    %124 = vector.shape_cast %123 : vector<16xf32> to vector<16x1xf32>
    %cst_54 = arith.constant dense<0.000000e+00> : vector<16xf32>
    %125 = vector.multi_reduction <add>, %49, %cst_54 [1] : vector<16x16xf32> to vector<16xf32>
    %126 = vector.shape_cast %125 : vector<16xf32> to vector<16x1xf32>
    %127 = arith.addf %124, %126 : vector<16x1xf32>
    %c0_55 = arith.constant 0 : index
    %c0_56 = arith.constant 0 : index
    %128 = vector.load %arg11[%c0_55, %c0_56] : memref<16x1xf32, #tpu.memory_space<vmem>>, vector<16x1xf32>
    tpu.vector_store %arg11[%c0_55, %c0_56], %127 {strides = array<i32>} : memref<16x1xf32, #tpu.memory_space<vmem>>, vector<16x1xf32>,
    return
  }
  func.func @transform_0(%arg0: i32) -> (i32, i32) {
    %c0_i32 = arith.constant 0 : i32
    %c0_i32_0 = arith.constant 0 : i32
    return %arg0, %c0_i32 : i32, i32
  }
  func.func @transform_1(%arg0: i32) -> (i32, i32) {
    %c0_i32 = arith.constant 0 : i32
    %c0_i32_0 = arith.constant 0 : i32
    return %arg0, %c0_i32 : i32, i32
  }
  func.func @transform_2(%arg0: i32) -> (i32, i32) {
    %c0_i32 = arith.constant 0 : i32
    %c0_i32_0 = arith.constant 0 : i32
    %c0_i32_1 = arith.constant 0 : i32
    return %c0_i32, %c0_i32_0 : i32, i32
  }
  func.func @transform_3(%arg0: i32) -> (i32, i32) {
    %c0_i32 = arith.constant 0 : i32
    %c0_i32_0 = arith.constant 0 : i32
    %c0_i32_1 = arith.constant 0 : i32
    return %c0_i32, %c0_i32_0 : i32, i32
  }
  func.func @transform_4(%arg0: i32) -> (i32, i32) {
    %c0_i32 = arith.constant 0 : i32
    %c0_i32_0 = arith.constant 0 : i32
    %c0_i32_1 = arith.constant 0 : i32
    return %c0_i32, %c0_i32_0 : i32, i32
  }
  func.func @transform_5(%arg0: i32) -> (i32, i32) {
    %c0_i32 = arith.constant 0 : i32
    %c0_i32_0 = arith.constant 0 : i32
    %c0_i32_1 = arith.constant 0 : i32
    return %c0_i32, %c0_i32_0 : i32, i32
  }
  func.func @transform_6(%arg0: i32) -> (i32, i32) {
    %c0_i32 = arith.constant 0 : i32
    %c0_i32_0 = arith.constant 0 : i32
    %c0_i32_1 = arith.constant 0 : i32
    return %c0_i32, %c0_i32_0 : i32, i32
  }
  func.func @transform_7(%arg0: i32) -> (i32, i32) {
    %c0_i32 = arith.constant 0 : i32
    %c0_i32_0 = arith.constant 0 : i32
    %c0_i32_1 = arith.constant 0 : i32
    return %c0_i32, %c0_i32_0 : i32, i32
  }
  func.func @transform_8(%arg0: i32) -> (i32, i32) {
    %c0_i32 = arith.constant 0 : i32
    %c0_i32_0 = arith.constant 0 : i32
    return %arg0, %c0_i32 : i32, i32
  }
  func.func @transform_9(%arg0: i32) -> (i32, i32) {
    %c0_i32 = arith.constant 0 : i32
    %c0_i32_0 = arith.constant 0 : i32
    return %arg0, %c0_i32 : i32, i32
  }
  func.func @transform_10(%arg0: i32) -> (i32, i32) {
    %c0_i32 = arith.constant 0 : i32
    %c0_i32_0 = arith.constant 0 : i32
    return %arg0, %c0_i32 : i32, i32
  }
}

</mosaic_0001>

<llo_original>
// kernel: squeeze.1
$region0: #{squeeze.1}
  %s0 = inlined_call_operand.vmem [shape: f32[16], index: 0, kind: input, shape index: {}]
  %s1 = inlined_call_operand.vmem [shape: f32[2,8], index: 1, kind: output, shape index: {}]
  $region1: #{squeeze.1} parent=0
    #allocation0 [shape = 'u8[4096]{0}', space=vmem, size = 0x1000, scoped, tag = 'scoped mem for output reshape']
    #allocation1 [shape = 'u8[4096]{0}', space=vmem, size = 0x1000, scoped, tag = 'scoped mem for input reshape']
    %s3 = sshllo.u32 0, 1
    %v4 = vld [vmem:[%s0] sm:%s3]
    %5 = vst [vmem:[#allocation1] sm:%s3] %v4
    %v6 = vld [vmem:[#allocation1] sm:$0x1]
    %vm7 = vcmask 64512
    %8 = vst.msk [vmem:[#allocation0] sm:$0x1] %vm7, %v6
    %v9 = vld [vmem:[#allocation1] sm:$0x1]
    %10 = vrot.lane.b32.xlu0 %v9, 120
    %v11 = vpop.permute.xlu0 %10
    %vm12 = vcmask 64512
    %s13 = scalar_lea.vmem [#allocation0], 1
    %14 = vst.msk [vmem:[%s13] sm:$0x1] %vm12, %v11
    %s16 = sshllo.u32 0, 2
    %v18 = vld [vmem:[#allocation0] sm:%s16]
    %s19 = sshllo.u32 0, 2
    %20 = vst [vmem:[%s1] sm:%s19] %v18

// kernel: glow_coupling_forward.1
$region0: #{glow_coupling_forward.1}
  #allocation0 [shape = 'u32[]', space=smem, size = 0x4, offset = 0x4, fixed_abs, tag = 'smem constant byte address 0x4 - core index']
  #allocation1 [shape = 'u32[144,128]{1,0:T(1,128)}', space=vmem, size = 0x12000, scoped, tag = 'internal scratch']
  %s0 = inlined_call_operand.vmem [shape: f32[16,16], index: 0, kind: input, shape index: {}]
  %s1 = inlined_call_operand.vmem [shape: f32[16,16], index: 1, kind: input, shape index: {}]
  %s2 = inlined_call_operand.vmem [shape: f32[16,8], index: 2, kind: input, shape index: {}]
  %s3 = inlined_call_operand.vmem [shape: f32[1,8], index: 3, kind: input, shape index: {}]
  %s4 = inlined_call_operand.vmem [shape: f32[8,16], index: 4, kind: input, shape index: {}]
  %s5 = inlined_call_operand.vmem [shape: f32[1,16], index: 5, kind: input, shape index: {}]
  %s6 = inlined_call_operand.vmem [shape: f32[8,16], index: 6, kind: input, shape index: {}]
  %s7 = inlined_call_operand.vmem [shape: f32[1,16], index: 7, kind: input, shape index: {}]
  %s8 = inlined_call_operand.vmem [shape: f32[16,16], index: 8, kind: output, shape index: {0}]
  %s9 = inlined_call_operand.vmem [shape: f32[16,16], index: 9, kind: output, shape index: {1}]
  %s10 = inlined_call_operand.vmem [shape: f32[16,1], index: 10, kind: output, shape index: {2}]
  %11 = xla_tuple %s8, %s9, %s10
  %s12 = sld [smem:[#allocation0]]
  $region58: #{glow_coupling_forward.1} parent=0
    _
  %s14 = ssub.s32 1, %s12
  %s15 = scalar_select 0, %s14, %s12
  // Predicated region
  $region2: #{glow_coupling_forward.1} parent=0 // pred_check
    _
  $region3: #{glow_coupling_forward.1} parent=0 // pred_check_branch
    %17 = sbr.rel (0) target = $region5
  $region4: #{glow_coupling_forward.1} parent=0 // pred_region
    _
  $region5: #{glow_coupling_forward.1} parent=0 // pred_fallthru
    _
  // Predicated region
  $region6: #{glow_coupling_forward.1} parent=0 // pred_check
    _
  $region7: #{glow_coupling_forward.1} parent=0 // pred_check_branch
    %19 = sbr.rel (0) target = $region9
  $region8: #{glow_coupling_forward.1} parent=0 // pred_region
    _
  $region9: #{glow_coupling_forward.1} parent=0 // pred_fallthru
    _
  // Predicated region
  $region10: #{glow_coupling_forward.1} parent=0 // pred_check
    _
  $region11: #{glow_coupling_forward.1} parent=0 // pred_check_branch
    %21 = sbr.rel (0) target = $region13
  $region12: #{glow_coupling_forward.1} parent=0 // pred_region
    _
  $region13: #{glow_coupling_forward.1} parent=0 // pred_fallthru
    _
  // Predicated region
  $region14: #{glow_coupling_forward.1} parent=0 // pred_check
    _
  $region15: #{glow_coupling_forward.1} parent=0 // pred_check_branch
    %23 = sbr.rel (0) target = $region17
  $region16: #{glow_coupling_forward.1} parent=0 // pred_region
    _
  $region17: #{glow_coupling_forward.1} parent=0 // pred_fallthru
    _
  // Predicated region
  $region18: #{glow_coupling_forward.1} parent=0 // pred_check
    _
  $region19: #{glow_coupling_forward.1} parent=0 // pred_check_branch
    %25 = sbr.rel (0) target = $region21
  $region20: #{glow_coupling_forward.1} parent=0 // pred_region
    _
  $region21: #{glow_coupling_forward.1} parent=0 // pred_fallthru
    _
  // Predicated region
  $region22: #{glow_coupling_forward.1} parent=0 // pred_check
    _
  $region23: #{glow_coupling_forward.1} parent=0 // pred_check_branch
    %27 = sbr.rel (0) target = $region25
  $region24: #{glow_coupling_forward.1} parent=0 // pred_region
    _
  $region25: #{glow_coupling_forward.1} parent=0 // pred_fallthru
    _
  // Predicated region
  $region26: #{glow_coupling_forward.1} parent=0 // pred_check
    _
  $region27: #{glow_coupling_forward.1} parent=0 // pred_check_branch
    %29 = sbr.rel (0) target = $region29
  $region28: #{glow_coupling_forward.1} parent=0 // pred_region
    _
  $region29: #{glow_coupling_forward.1} parent=0 // pred_fallthru
    _
  // Predicated region
  $region30: #{glow_coupling_forward.1} parent=0 // pred_check
    _
  $region31: #{glow_coupling_forward.1} parent=0 // pred_check_branch
    %31 = sbr.rel (0) target = $region33
  $region32: #{glow_coupling_forward.1} parent=0 // pred_region
    _
  $region33: #{glow_coupling_forward.1} parent=0 // pred_fallthru
    _
  %v32 = vld [vmem:[%s0] sm:$0xff]
  %v33 = vld [vmem:[%s0 + $0x8] sm:$0xff]
  %v34 = vld [vmem:[%s1] sm:$0xff]
  %v35 = vld [vmem:[%s1 + $0x8] sm:$0xff]
  %v36 = vmul.f32 %v32, 0.2
  %v37 = vmul.f32 %v33, 0.2
  %v38 = vand.u32 2147483647, %v36
  %v39 = vand.u32 2147483647, %v37
  %vm40 = vcmp.gt.f32.partialorder %v38, 2.4142137
  %vm41 = vcmp.gt.f32.partialorder %v39, 2.4142137
  %vm42 = vcmp.gt.f32.partialorder %v38, 0.41421357
  %vm43 = vcmp.gt.f32.partialorder %v39, 0.41421357
  %v44 = vmax.f32 %v38, 1e-30
  %v45 = vmax.f32 %v39, 1e-30
  %v46 = vrcp.pop %v44
  %v47 = vrcp.pop %v45
  %v48 = vadd.f32 %v38, 1.0
  %v49 = vadd.f32 %v39, 1.0
  %v50 = vrcp.pop %v48
  %v51 = vrcp.pop %v49
  %v52 = vsub.f32 0.0, %v46
  %v53 = vsub.f32 0.0, %v47
  %v54 = vsub.f32 %v38, 1.0
  %v55 = vsub.f32 %v39, 1.0
  %v56 = vmul.f32 %v54, %v50
  %v57 = vmul.f32 %v55, %v51
  %v58 = vsel %vm42, %v56, %v38
  %v59 = vsel %vm43, %v57, %v39
  %v60 = vsel %vm40, %v52, %v58
  %v61 = vsel %vm41, %v53, %v59
  %v62 = vsel %vm42, 0.7853982, 0.0
  %v63 = vsel %vm43, 0.7853982, 0.0
  %v64 = vsel %vm40, 1.5707964, %v62
  %v65 = vsel %vm41, 1.5707964, %v63
  %v66 = vmul.f32 %v60, %v60
  %v67 = vmul.f32 %v61, %v61
  %v68 = vmul.f32 %v66, 0.080537446
  %v69 = vmul.f32 %v67, 0.080537446
  %v70 = vsub.f32 %v68, 0.13877685
  %v71 = vsub.f32 %v69, 0.13877685
  %v72 = vmul.f32 %v70, %v66
  %v73 = vmul.f32 %v71, %v67
  %v74 = vadd.f32 %v72, 0.19977711
  %v75 = vadd.f32 %v73, 0.19977711
  %v76 = vmul.f32 %v74, %v66
  %v77 = vmul.f32 %v75, %v67
  %v78 = vsub.f32 %v76, 0.3333295
  %v79 = vsub.f32 %v77, 0.3333295
  %v80 = vmul.f32 %v78, %v66
  %v81 = vmul.f32 %v79, %v67
  %v82 = vmul.f32 %v80, %v60
  %v83 = vmul.f32 %v81, %v61
  %v84 = vadd.f32 %v82, %v60
  %v85 = vadd.f32 %v83, %v61
  %v86 = vadd.f32 %v64, %v84
  %v87 = vadd.f32 %v65, %v85
  %v90 = vand.u32 %v36, 2147483648
  %v91 = vand.u32 %v37, 2147483648
  %v94 = vor.u32 %v86, %v90
  %v95 = vor.u32 %v87, %v91
  %v98 = vmul.f32 %v94, 3.18
  %v99 = vmul.f32 %v95, 3.18
  %v100 = vmul.f32 %v98, 1.442695
  %v101 = vpow.pop %v100
  %v102 = vmul.f32 %v99, 1.442695
  %v103 = vpow.pop %v102
  %v104 = vmul.f32 %v101, %v32
  %v105 = vmul.f32 %v103, %v33
  %v106 = vadd.f32 %v104, %v34
  %v107 = vadd.f32 %v105, %v35
  %v108 = vld [vmem:[%s2] sm:$0xff]
  %v109 = vld [vmem:[%s2 + $0x8] sm:$0xff]
  %v110 = vld [vmem:[%s3] sm:$0x1]
  %v112 = vlaneseq
  %v113 = vshrl.u32 %v112, 7
  %v114 = vsub.s32 0, %v113
  %v115 = vrot.slane %v110, %v114
  %vm117 = vcmask 130048
  %v119 = vsel %vm117, %v106, 0
  %v122 = vsel %vm117, %v107, 0
  %124 = vmatprep.subr.mxu0 0.0
  %125 = vmatpush1.msra.mxu0 %v108
  %126 = vmatprep.subr.mxu0 0.0
  %127 = vmatpush1.msra.mxu0 %v109
  %128 = vmatprep.subr.mxu0 0.0
  %129 = vmatpush1.msra.mxu0 0.0
  %130 = vmatprep.subr.mxu0 0.0
  %131 = vmatpush1.msra.mxu0 0.0
  %132 = vmatprep.subr.mxu0 0.0
  %133 = vmatpush1.msra.mxu0 0.0
  %134 = vmatprep.subr.mxu0 0.0
  %135 = vmatpush1.msra.mxu0 0.0
  %136 = vmatprep.subr.mxu0 0.0
  %137 = vmatpush1.msra.mxu0 0.0
  %138 = vmatprep.subr.mxu0 0.0
  %139 = vmatpush1.msra.mxu0 0.0
  %140 = vmatprep.subr.mxu0 0.0
  %141 = vmatpush1.msra.mxu0 0.0
  %142 = vmatprep.subr.mxu0 0.0
  %143 = vmatpush1.msra.mxu0 0.0
  %144 = vmatprep.subr.mxu0 0.0
  %145 = vmatpush1.msra.mxu0 0.0
  %146 = vmatprep.subr.mxu0 0.0
  %147 = vmatpush1.msra.mxu0 0.0
  %148 = vmatprep.subr.mxu0 0.0
  %149 = vmatpush1.msra.mxu0 0.0
  %150 = vmatprep.subr.mxu0 0.0
  %151 = vmatpush1.msra.mxu0 0.0
  %152 = vmatprep.subr.mxu0 0.0
  %153 = vmatpush1.msra.mxu0 0.0
  %154 = vmatprep.subr.mxu0 0.0
  %155 = vmatpush1.msra.mxu0 0.0
  %156 = vmatprep.subr.mxu0 0.0
  %157 = vmatpush1.msra.mxu0 0.0
  %158 = vmatprep.subr.mxu0 0.0
  %159 = vmatpush1.msra.mxu0 0.0
  %160 = vmatprep.subr.mxu0 0.0
  %161 = vmatpush1.msra.mxu0 0.0
  %162 = vmatprep.subr.mxu0 0.0
  %163 = vmatpush1.msra.mxu0 0.0
  %164 = vmatprep.subr.mxu0 0.0
  %165 = vmatpush1.msra.mxu0 0.0
  %166 = vmatprep.subr.mxu0 0.0
  %167 = vmatpush1.msra.mxu0 0.0
  %168 = vmatprep.subr.mxu0 0.0
  %169 = vmatpush1.msra.mxu0 0.0
  %170 = vmatprep.subr.mxu0 0.0
  %171 = vmatpush1.msra.mxu0 0.0
  %172 = vmatprep.subr.mxu0 0.0
  %173 = vmatpush1.msra.mxu0 0.0
  %174 = vmatprep.subr.mxu0 0.0
  %175 = vmatpush1.msra.mxu0 0.0
  %176 = vmatprep.subr.mxu0 0.0
  %177 = vmatpush1.msra.mxu0 0.0
  %178 = vmatprep.subr.mxu0 0.0
  %179 = vmatpush1.msra.mxu0 0.0
  %180 = vmatprep.subr.mxu0 0.0
  %181 = vmatpush1.msra.mxu0 0.0
  %182 = vmatprep.subr.mxu0 0.0
  %183 = vmatpush1.msra.mxu0 0.0
  %184 = vmatprep.subr.mxu0 0.0
  %185 = vmatpush1.msra.mxu0 0.0
  %186 = vmatprep.subr.mxu0 0.0
  %187 = vmatpush1.msra.mxu0 0.0
  %188 = vmatprep.mubr.f32.mxu0 0.0
  %189 = vmatmul.mubr.f32.gmra.mrb[0].mxu0 %v119
  %v190 = vpop.f32.mrb[0].mxu0
  %v191 = vadd.f32 %v115, %v190
  %v192 = vpop.f32.mrb[0].mxu0
  %193 = vmatprep.mubr.f32.mxu0 0.0
  %194 = vmatmul.mubr.f32.gmra.mrb[0].mxu0 %v122
  %v195 = vpop.f32.mrb[0].mxu0
  %v196 = vadd.f32 %v115, %v195
  %v197 = vpop.f32.mrb[0].mxu0
  %198 = vdwg.mxu0
  %v199 = vmax.f32 %v191, 0.0
  %v200 = vmax.f32 %v196, 0.0
  %v201 = vld [vmem:[%s4] sm:$0xff]
  %v202 = vld [vmem:[%s5] sm:$0x1]
  %v204 = vlaneseq
  %v205 = vshrl.u32 %v204, 7
  %v206 = vsub.s32 0, %v205
  %v207 = vrot.slane %v202, %v206
  %vm209 = vcmask 64512
  %v211 = vsel %vm209, %v199, 0
  %v214 = vsel %vm209, %v200, 0
  %216 = vmatprep.subr.mxu0 0.0
  %217 = vmatpush1.msra.mxu0 %v201
  %218 = vmatprep.subr.mxu0 0.0
  %219 = vmatpush1.msra.mxu0 0.0
  %220 = vmatprep.subr.mxu0 0.0
  %221 = vmatpush1.msra.mxu0 0.0
  %222 = vmatprep.subr.mxu0 0.0
  %223 = vmatpush1.msra.mxu0 0.0
  %224 = vmatprep.subr.mxu0 0.0
  %225 = vmatpush1.msra.mxu0 0.0
  %226 = vmatprep.subr.mxu0 0.0
  %227 = vmatpush1.msra.mxu0 0.0
  %228 = vmatprep.subr.mxu0 0.0
  %229 = vmatpush1.msra.mxu0 0.0
  %230 = vmatprep.subr.mxu0 0.0
  %231 = vmatpush1.msra.mxu0 0.0
  %232 = vmatprep.subr.mxu0 0.0
  %233 = vmatpush1.msra.mxu0 0.0
  %234 = vmatprep.subr.mxu0 0.0
  %235 = vmatpush1.msra.mxu0 0.0
  %236 = vmatprep.subr.mxu0 0.0
  %237 = vmatpush1.msra.mxu0 0.0
  %238 = vmatprep.subr.mxu0 0.0
  %239 = vmatpush1.msra.mxu0 0.0
  %240 = vmatprep.subr.mxu0 0.0
  %241 = vmatpush1.msra.mxu0 0.0
  %242 = vmatprep.subr.mxu0 0.0
  %243 = vmatpush1.msra.mxu0 0.0
  %244 = vmatprep.subr.mxu0 0.0
  %245 = vmatpush1.msra.mxu0 0.0
  %246 = vmatprep.subr.mxu0 0.0
  %247 = vmatpush1.msra.mxu0 0.0
  %248 = vmatprep.subr.mxu0 0.0
  %249 = vmatpush1.msra.mxu0 0.0
  %250 = vmatprep.subr.mxu0 0.0
  %251 = vmatpush1.msra.mxu0 0.0
  %252 = vmatprep.subr.mxu0 0.0
  %253 = vmatpush1.msra.mxu0 0.0
  %254 = vmatprep.subr.mxu0 0.0
  %255 = vmatpush1.msra.mxu0 0.0
  %256 = vmatprep.subr.mxu0 0.0
  %257 = vmatpush1.msra.mxu0 0.0
  %258 = vmatprep.subr.mxu0 0.0
  %259 = vmatpush1.msra.mxu0 0.0
  %260 = vmatprep.subr.mxu0 0.0
  %261 = vmatpush1.msra.mxu0 0.0
  %262 = vmatprep.subr.mxu0 0.0
  %263 = vmatpush1.msra.mxu0 0.0
  %264 = vmatprep.subr.mxu0 0.0
  %265 = vmatpush1.msra.mxu0 0.0
  %266 = vmatprep.subr.mxu0 0.0
  %267 = vmatpush1.msra.mxu0 0.0
  %268 = vmatprep.subr.mxu0 0.0
  %269 = vmatpush1.msra.mxu0 0.0
  %270 = vmatprep.subr.mxu0 0.0
  %271 = vmatpush1.msra.mxu0 0.0
  %272 = vmatprep.subr.mxu0 0.0
  %273 = vmatpush1.msra.mxu0 0.0
  %274 = vmatprep.subr.mxu0 0.0
  %275 = vmatpush1.msra.mxu0 0.0
  %276 = vmatprep.subr.mxu0 0.0
  %277 = vmatpush1.msra.mxu0 0.0
  %278 = vmatprep.subr.mxu0 0.0
  %279 = vmatpush1.msra.mxu0 0.0
  %280 = vmatprep.mubr.f32.mxu0 0.0
  %281 = vmatmul.mubr.f32.gmra.mrb[0].mxu0 %v211
  %v282 = vpop.f32.mrb[0].mxu0
  %v283 = vadd.f32 %v207, %v282
  %v284 = vpop.f32.mrb[0].mxu0
  %285 = vmatprep.mubr.f32.mxu0 0.0
  %286 = vmatmul.mubr.f32.gmra.mrb[0].mxu0 %v214
  %v287 = vpop.f32.mrb[0].mxu0
  %v288 = vadd.f32 %v207, %v287
  %v289 = vpop.f32.mrb[0].mxu0
  %290 = vdwg.mxu0
  %v291 = vld [vmem:[%s6] sm:$0xff]
  %v292 = vld [vmem:[%s7] sm:$0x1]
  %v294 = vlaneseq
  %v295 = vshrl.u32 %v294, 7
  %v296 = vsub.s32 0, %v295
  %v297 = vrot.slane %v292, %v296
  %299 = vmatprep.subr.mxu0 0.0
  %300 = vmatpush1.msra.mxu0 %v291
  %301 = vmatprep.subr.mxu0 0.0
  %302 = vmatpush1.msra.mxu0 0.0
  %303 = vmatprep.subr.mxu0 0.0
  %304 = vmatpush1.msra.mxu0 0.0
  %305 = vmatprep.subr.mxu0 0.0
  %306 = vmatpush1.msra.mxu0 0.0
  %307 = vmatprep.subr.mxu0 0.0
  %308 = vmatpush1.msra.mxu0 0.0
  %309 = vmatprep.subr.mxu0 0.0
  %310 = vmatpush1.msra.mxu0 0.0
  %311 = vmatprep.subr.mxu0 0.0
  %312 = vmatpush1.msra.mxu0 0.0
  %313 = vmatprep.subr.mxu0 0.0
  %314 = vmatpush1.msra.mxu0 0.0
  %315 = vmatprep.subr.mxu0 0.0
  %316 = vmatpush1.msra.mxu0 0.0
  %317 = vmatprep.subr.mxu0 0.0
  %318 = vmatpush1.msra.mxu0 0.0
  %319 = vmatprep.subr.mxu0 0.0
  %320 = vmatpush1.msra.mxu0 0.0
  %321 = vmatprep.subr.mxu0 0.0
  %322 = vmatpush1.msra.mxu0 0.0
  %323 = vmatprep.subr.mxu0 0.0
  %324 = vmatpush1.msra.mxu0 0.0
  %325 = vmatprep.subr.mxu0 0.0
  %326 = vmatpush1.msra.mxu0 0.0
  %327 = vmatprep.subr.mxu0 0.0
  %328 = vmatpush1.msra.mxu0 0.0
  %329 = vmatprep.subr.mxu0 0.0
  %330 = vmatpush1.msra.mxu0 0.0
  %331 = vmatprep.subr.mxu0 0.0
  %332 = vmatpush1.msra.mxu0 0.0
  %333 = vmatprep.subr.mxu0 0.0
  %334 = vmatpush1.msra.mxu0 0.0
  %335 = vmatprep.subr.mxu0 0.0
  %336 = vmatpush1.msra.mxu0 0.0
  %337 = vmatprep.subr.mxu0 0.0
  %338 = vmatpush1.msra.mxu0 0.0
  %339 = vmatprep.subr.mxu0 0.0
  %340 = vmatpush1.msra.mxu0 0.0
  %341 = vmatprep.subr.mxu0 0.0
  %342 = vmatpush1.msra.mxu0 0.0
  %343 = vmatprep.subr.mxu0 0.0
  %344 = vmatpush1.msra.mxu0 0.0
  %345 = vmatprep.subr.mxu0 0.0
  %346 = vmatpush1.msra.mxu0 0.0
  %347 = vmatprep.subr.mxu0 0.0
  %348 = vmatpush1.msra.mxu0 0.0
  %349 = vmatprep.subr.mxu0 0.0
  %350 = vmatpush1.msra.mxu0 0.0
  %351 = vmatprep.subr.mxu0 0.0
  %352 = vmatpush1.msra.mxu0 0.0
  %353 = vmatprep.subr.mxu0 0.0
  %354 = vmatpush1.msra.mxu0 0.0
  %355 = vmatprep.subr.mxu0 0.0
  %356 = vmatpush1.msra.mxu0 0.0
  %357 = vmatprep.subr.mxu0 0.0
  %358 = vmatpush1.msra.mxu0 0.0
  %359 = vmatprep.subr.mxu0 0.0
  %360 = vmatpush1.msra.mxu0 0.0
  %361 = vmatprep.subr.mxu0 0.0
  %362 = vmatpush1.msra.mxu0 0.0
  %363 = vmatprep.mubr.f32.mxu0 0.0
  %364 = vmatmul.mubr.f32.gmra.mrb[0].mxu0 %v211
  %v365 = vpop.f32.mrb[0].mxu0
  %v366 = vadd.f32 %v297, %v365
  %v367 = vpop.f32.mrb[0].mxu0
  %368 = vmatprep.mubr.f32.mxu0 0.0
  %369 = vmatmul.mubr.f32.gmra.mrb[0].mxu0 %v214
  %v370 = vpop.f32.mrb[0].mxu0
  %v371 = vadd.f32 %v297, %v370
  %v372 = vpop.f32.mrb[0].mxu0
  %373 = vdwg.mxu0
  %v374 = vmul.f32 %v283, 0.2
  %v375 = vmul.f32 %v288, 0.2
  %v376 = vand.u32 2147483647, %v374
  %v377 = vand.u32 2147483647, %v375
  %vm378 = vcmp.gt.f32.partialorder %v376, 2.4142137
  %vm379 = vcmp.gt.f32.partialorder %v377, 2.4142137
  %vm380 = vcmp.gt.f32.partialorder %v376, 0.41421357
  %vm381 = vcmp.gt.f32.partialorder %v377, 0.41421357
  %v382 = vmax.f32 %v376, 1e-30
  %v383 = vmax.f32 %v377, 1e-30
  %v384 = vrcp.pop %v382
  %v385 = vrcp.pop %v383
  %v386 = vadd.f32 %v376, 1.0
  %v387 = vadd.f32 %v377, 1.0
  %v388 = vrcp.pop %v386
  %v389 = vrcp.pop %v387
  %v390 = vsub.f32 0.0, %v384
  %v391 = vsub.f32 0.0, %v385
  %v392 = vsub.f32 %v376, 1.0
  %v393 = vsub.f32 %v377, 1.0
  %v394 = vmul.f32 %v392, %v388
  %v395 = vmul.f32 %v393, %v389
  %v396 = vsel %vm380, %v394, %v376
  %v397 = vsel %vm381, %v395, %v377
  %v398 = vsel %vm378, %v390, %v396
  %v399 = vsel %vm379, %v391, %v397
  %v400 = vsel %vm380, 0.7853982, 0.0
  %v401 = vsel %vm381, 0.7853982, 0.0
  %v402 = vsel %vm378, 1.5707964, %v400
  %v403 = vsel %vm379, 1.5707964, %v401
  %v404 = vmul.f32 %v398, %v398
  %v405 = vmul.f32 %v399, %v399
  %v406 = vmul.f32 %v404, 0.080537446
  %v407 = vmul.f32 %v405, 0.080537446
  %v408 = vsub.f32 %v406, 0.13877685
  %v409 = vsub.f32 %v407, 0.13877685
  %v410 = vmul.f32 %v408, %v404
  %v411 = vmul.f32 %v409, %v405
  %v412 = vadd.f32 %v410, 0.19977711
  %v413 = vadd.f32 %v411, 0.19977711
  %v414 = vmul.f32 %v412, %v404
  %v415 = vmul.f32 %v413, %v405
  %v416 = vsub.f32 %v414, 0.3333295
  %v417 = vsub.f32 %v415, 0.3333295
  %v418 = vmul.f32 %v416, %v404
  %v419 = vmul.f32 %v417, %v405
  %v420 = vmul.f32 %v418, %v398
  %v421 = vmul.f32 %v419, %v399
  %v422 = vadd.f32 %v420, %v398
  %v423 = vadd.f32 %v421, %v399
  %v424 = vadd.f32 %v402, %v422
  %v425 = vadd.f32 %v403, %v423
  %v428 = vand.u32 %v374, 2147483648
  %v429 = vand.u32 %v375, 2147483648
  %v432 = vor.u32 %v424, %v428
  %v433 = vor.u32 %v425, %v429
  %v436 = vmul.f32 %v432, 3.18
  %v437 = vmul.f32 %v433, 3.18
  %v438 = vmul.f32 %v436, 1.442695
  %v439 = vpow.pop %v438
  %v440 = vmul.f32 %v437, 1.442695
  %v441 = vpow.pop %v440
  %v442 = vmul.f32 %v439, %v34
  %v443 = vmul.f32 %v441, %v35
  %v444 = vadd.f32 %v442, %v366
  %v445 = vadd.f32 %v443, %v371
  %446 = vst.msk [vmem:[%s8] sm:$0xff] %vm117, %v106
  %447 = vst.msk [vmem:[%s8 + $0x8] sm:$0xff] %vm117, %v107
  %448 = vst.msk [vmem:[%s9] sm:$0xff] %vm117, %v444
  %449 = vst.msk [vmem:[%s9 + $0x8] sm:$0xff] %vm117, %v445
  %v450 = vsel %vm117, %v436, 0.0
  %451 = vadd.xlane.f32.xlu0 %v450
  %v452 = vpop.xlane.xlu0 %451
  %v453 = vsel %vm117, %v437, 0.0
  %454 = vadd.xlane.f32.xlu0 %v453
  %v455 = vpop.xlane.xlu0 %454
  %v456 = vsel %vm117, %v98, 0.0
  %457 = vadd.xlane.f32.xlu0 %v456
  %v458 = vpop.xlane.xlu0 %457
  %v459 = vsel %vm117, %v99, 0.0
  %460 = vadd.xlane.f32.xlu0 %v459
  %v461 = vpop.xlane.xlu0 %460
  %v462 = vadd.f32 %v452, %v458
  %v463 = vadd.f32 %v455, %v461
  %vm464 = vcmask 7168
  %465 = vst.msk [vmem:[%s10] sm:$0xff] %vm464, %v462
  %466 = vst.msk [vmem:[%s10 + $0x8] sm:$0xff] %vm464, %v463
  // Predicated region
  $region34: #{glow_coupling_forward.1} parent=0 // pred_check
    _
  $region35: #{glow_coupling_forward.1} parent=0 // pred_check_branch
    %468 = sbr.rel (0) target = $region37
  $region36: #{glow_coupling_forward.1} parent=0 // pred_region
    _
  $region37: #{glow_coupling_forward.1} parent=0 // pred_fallthru
    _
  // Predicated region
  $region38: #{glow_coupling_forward.1} parent=0 // pred_check
    _
  $region39: #{glow_coupling_forward.1} parent=0 // pred_check_branch
    %470 = sbr.rel (0) target = $region41
  $region40: #{glow_coupling_forward.1} parent=0 // pred_region
    _
  $region41: #{glow_coupling_forward.1} parent=0 // pred_fallthru
    _
  // Predicated region
  $region42: #{glow_coupling_forward.1} parent=0 // pred_check
    _
  $region43: #{glow_coupling_forward.1} parent=0 // pred_check_branch
    %472 = sbr.rel (0) target = $region45
  $region44: #{glow_coupling_forward.1} parent=0 // pred_region
    _
  $region45: #{glow_coupling_forward.1} parent=0 // pred_fallthru
    _
  // Predicated region
  $region46: #{glow_coupling_forward.1} parent=0 // pred_check
    _
  $region47: #{glow_coupling_forward.1} parent=0 // pred_check_branch
    %474 = sbr.rel (0) target = $region49
  $region48: #{glow_coupling_forward.1} parent=0 // pred_region
    _
  $region49: #{glow_coupling_forward.1} parent=0 // pred_fallthru
    _
  // Predicated region
  $region50: #{glow_coupling_forward.1} parent=0 // pred_check
    _
  $region51: #{glow_coupling_forward.1} parent=0 // pred_check_branch
    %476 = sbr.rel (0) target = $region53
  $region52: #{glow_coupling_forward.1} parent=0 // pred_region
    _
  $region53: #{glow_coupling_forward.1} parent=0 // pred_fallthru
    _
  // Predicated region
  $region54: #{glow_coupling_forward.1} parent=0 // pred_check
    _
  $region55: #{glow_coupling_forward.1} parent=0 // pred_check_branch
    %478 = sbr.rel (0) target = $region57
  $region56: #{glow_coupling_forward.1} parent=0 // pred_region
    _
  $region57: #{glow_coupling_forward.1} parent=0 // pred_fallthru
    _

</llo_original>
